<compile_context>
chip_gen: v7x
topology: tpu7x:2x2x1
jax: 0.10.0
libtpu: 0.0.40
codegen_flags: <defaults>
</compile_context>

<pallas_src>
import jax
import jax.numpy as jnp
from jax.experimental import pallas as pl
from jax.experimental.pallas import tpu as pltpu


def _round_up(x, m):
    return ((x + m - 1) // m) * m


# ---------------------------------------------------------------------------
# Kernel: out[n, :, tile] = W @ x[n, :, tile] + b   (bf16 MXU, f32 accumulate)
# ---------------------------------------------------------------------------
def _conv1x1_kernel(x_ref, w_ref, b_ref, o_ref):
    # x_ref: (Cin, t_hw) f32   w_ref: (Cout, Cin) bf16   b_ref: (Cout, 1) f32
    # bf16 cast happens on the VMEM tile (free on the VPU); no wrapper-side
    # pad/cast pass over the activations.
    x_bf = x_ref[...].astype(jnp.bfloat16)
    acc = jnp.dot(w_ref[...], x_bf, preferred_element_type=jnp.float32)
    o_ref[...] = acc + b_ref[...]


def conv1x1_nchw(x_nchw, w_oc_ic, bias, *, thw_cap=2048):
    """1x1 conv with bias on an NCHW tensor via a Pallas MXU matmul.

    x_nchw : (N, Cin, H, W) float32
    w_oc_ic: (Cout, Cin)   -- PyTorch Conv2d weight (Cout, Cin, 1, 1) squeezed
    bias   : (Cout,)
    returns (N, Cout, H, W) float32
    """
    n, cin, h, w = x_nchw.shape
    cout = w_oc_ic.shape[0]
    hw = h * w

    # Spatial tile: lane-aligned (multiple of 128), capped so per-step VMEM
    # stays small even double-buffered; big tiles amortize per-step overhead.
    t_hw = min(_round_up(hw, 128), thw_cap)
    hw_pad = _round_up(hw, t_hw)

    x = x_nchw.reshape(n, cin, hw)          # contiguous reshape: no data copy
    if hw_pad != hw:
        # Only for H*W not a multiple of the tile (not hit at typical shapes).
        x = jnp.pad(x, ((0, 0), (0, 0), (0, hw_pad - hw)))

    w_bf = w_oc_ic.astype(jnp.bfloat16)               # tiny, VMEM-resident
    b_col = bias.astype(jnp.float32).reshape(cout, 1)  # broadcast over lanes

    out = pl.pallas_call(
        _conv1x1_kernel,
        out_shape=jax.ShapeDtypeStruct((n, cout, hw_pad), jnp.float32),
        grid=(n, hw_pad // t_hw),
        in_specs=[
            pl.BlockSpec((None, cin, t_hw), lambda i, j: (i, 0, j)),
            pl.BlockSpec((cout, cin), lambda i, j: (0, 0)),   # resident weight
            pl.BlockSpec((cout, 1), lambda i, j: (0, 0)),     # resident bias
        ],
        out_specs=pl.BlockSpec((None, cout, t_hw), lambda i, j: (i, 0, j)),
        compiler_params=pltpu.CompilerParams(
            dimension_semantics=("parallel", "parallel"),
        ),
    )(x, w_bf, b_col)

    if hw_pad != hw:
        out = out[:, :, :hw]
    return out.reshape(n, cout, h, w)


# ---------------------------------------------------------------------------
# Tail2D forward (PyTorch semantics; NCHW in / NCHW out).
# ---------------------------------------------------------------------------
def tail2d_forward(params, x_nchw):
    return conv1x1_nchw(x_nchw, params["w"], params["b"])


def init_params(key, in_channels, out_channels):
    k1, k2 = jax.random.split(key)
    # Stored as (Cout, Cin), matching PyTorch Conv2d (Cout, Cin, 1, 1) squeezed.
    w = jax.random.normal(k1, (out_channels, in_channels), jnp.float32) * 0.05
    b = jax.random.normal(k2, (out_channels,), jnp.float32) * 0.05
    return {"w": w, "b": b}


if __name__ == "__main__":
    key = jax.random.PRNGKey(0)
    kx, kp = jax.random.split(key)

    N, Cin, Cout, H, W = 2, 32, 4, 16, 16
    x = jax.random.normal(kx, (N, Cin, H, W), jnp.float32)
    params = init_params(kp, Cin, Cout)

    y = jax.jit(tail2d_forward)(params, x)
    jax.block_until_ready(y)
    assert y.shape == (N, Cout, H, W), y.shape
    assert bool(jnp.all(jnp.isfinite(y)))

    # Reference check: same bf16-rounded operands, f32 accumulation.
    # (bf16 MXU operands; flag if this tail must feed exact-f32 logits.)
    x_bf = x.astype(jnp.bfloat16).astype(jnp.float32)
    w_bf = params["w"].astype(jnp.bfloat16).astype(jnp.float32)
    ref = jnp.einsum("nchw,oc->nohw", x_bf, w_bf) + params["b"][None, :, None, None]
    assert bool(jnp.allclose(y, ref, atol=1e-2, rtol=1e-2))

    print("KERNEL_OK")
</pallas_src>

<mosaic_0001>
module attributes {stable_mosaic.version = 11 : i64} {
  func.func @_conv1x1_kernel(%arg0: i32, %arg1: i32, %arg2: memref<1x32x256xf32, #tpu.memory_space<vmem>>, %arg3: memref<4x32xbf16, #tpu.memory_space<vmem>>, %arg4: memref<4x1xf32, #tpu.memory_space<vmem>>, %arg5: memref<1x4x256xf32, #tpu.memory_space<vmem>>) attributes {dimension_semantics = [#tpu.dimension_semantics<parallel>, #tpu.dimension_semantics<parallel>], iteration_bounds = array<i64: 2, 1>, scalar_prefetch = 0 : i64, scratch_operands = 0 : i64, tpu.core_type = #tpu.core_type<tc>, window_params = [{transform_indices = @transform_0, window_bounds = array<i64: 1, 32, 256>}, {pipeline_mode = #tpu.pipeline_mode<synchronous>, transform_indices = @transform_1, window_bounds = array<i64: 4, 32>}, {pipeline_mode = #tpu.pipeline_mode<synchronous>, transform_indices = @transform_2, window_bounds = array<i64: 4, 1>}, {transform_indices = @transform_3, window_bounds = array<i64: 1, 4, 256>}]} {
    %c0 = arith.constant 0 : index
    %c0_0 = arith.constant 0 : index
    %c0_1 = arith.constant 0 : index
    %0 = vector.load %arg2[%c0, %c0_0, %c0_1] : memref<1x32x256xf32, #tpu.memory_space<vmem>>, vector<1x32x256xf32>
    %1 = vector.shape_cast %0 : vector<1x32x256xf32> to vector<32x256xf32>
    %2 = arith.truncf %1 : vector<32x256xf32> to vector<32x256xbf16>
    %c0_2 = arith.constant 0 : index
    %c0_3 = arith.constant 0 : index
    %3 = vector.load %arg3[%c0_2, %c0_3] : memref<4x32xbf16, #tpu.memory_space<vmem>>, vector<4x32xbf16>
    %cst = arith.constant dense<0.000000e+00> : vector<4x256xf32>
    %4 = tpu.matmul %3, %2, %cst {dimension_numbers = #tpu.dot_dimension_numbers<[1], [0], [0], [1], [0, 0, 1, 1], [], []>} : vector<4x32xbf16>, vector<32x256xbf16>, vector<4x256xf32> -> vector<4x256xf32>
    %c0_4 = arith.constant 0 : index
    %c0_5 = arith.constant 0 : index
    %5 = vector.load %arg4[%c0_4, %c0_5] : memref<4x1xf32, #tpu.memory_space<vmem>>, vector<4x1xf32>
    %6 = vector.broadcast %5 : vector<4x1xf32> to vector<4x256xf32>
    %7 = arith.addf %4, %6 : vector<4x256xf32>
    %c0_6 = arith.constant 0 : index
    %c0_7 = arith.constant 0 : index
    %c0_8 = arith.constant 0 : index
    %8 = vector.load %arg5[%c0_6, %c0_7, %c0_8] : memref<1x4x256xf32, #tpu.memory_space<vmem>>, vector<1x4x256xf32>
    %9 = vector.shape_cast %8 : vector<1x4x256xf32> to vector<4x256xf32>
    %10 = vector.shape_cast %7 : vector<4x256xf32> to vector<1x4x256xf32>
    tpu.vector_store %arg5[%c0_6, %c0_7, %c0_8], %10 {strides = array<i32>} : memref<1x4x256xf32, #tpu.memory_space<vmem>>, vector<1x4x256xf32>,
    return
  }
  func.func @transform_0(%arg0: i32, %arg1: i32) -> (i32, i32, i32) {
    %c0_i32 = arith.constant 0 : i32
    %c0_i32_0 = arith.constant 0 : i32
    return %arg0, %c0_i32, %arg1 : i32, i32, i32
  }
  func.func @transform_1(%arg0: i32, %arg1: i32) -> (i32, i32) {
    %c0_i32 = arith.constant 0 : i32
    %c0_i32_0 = arith.constant 0 : i32
    %c0_i32_1 = arith.constant 0 : i32
    return %c0_i32, %c0_i32_0 : i32, i32
  }
  func.func @transform_2(%arg0: i32, %arg1: i32) -> (i32, i32) {
    %c0_i32 = arith.constant 0 : i32
    %c0_i32_0 = arith.constant 0 : i32
    %c0_i32_1 = arith.constant 0 : i32
    return %c0_i32, %c0_i32_0 : i32, i32
  }
  func.func @transform_3(%arg0: i32, %arg1: i32) -> (i32, i32, i32) {
    %c0_i32 = arith.constant 0 : i32
    %c0_i32_0 = arith.constant 0 : i32
    return %arg0, %c0_i32, %arg1 : i32, i32, i32
  }
}

</mosaic_0001>

<llo_original>
// kernel: tail2d_forward.1
$region0: #{tail2d_forward.1}
  #allocation0 [shape = 'u32[]', space=smem, size = 0x4, offset = 0x4, fixed_abs, tag = 'smem constant byte address 0x4 - core index']
  #allocation1 [shape = 'u32[144,128]{1,0:T(1,128)}', space=vmem, size = 0x12000, scoped, tag = 'internal scratch']
  %s0 = inlined_call_operand.vmem [shape: f32[2,32,256], index: 0, kind: input, shape index: {}]
  %s1 = inlined_call_operand.vmem [shape: bf16[4,32], index: 1, kind: input, shape index: {}]
  %s2 = inlined_call_operand.vmem [shape: f32[4,1], index: 2, kind: input, shape index: {}]
  %s3 = inlined_call_operand.vmem [shape: f32[2,4,256], index: 3, kind: output, shape index: {}]
  %s4 = sld [smem:[#allocation0]]
  $region45: #{tail2d_forward.1} parent=0
    _
  %s6 = ssub.s32 1, %s4
  %s7 = scalar_select 0, %s6, %s4
  loop: start=0, step=1, limit=4
  $region2: #{tail2d_forward.1} parent=0 // loop_pre_header
    _
  $region3: #{tail2d_forward.1} parent=0 // loop_header
    %s9 = sphi 0, %s13
    %p10 = scmp.ge.s32.totalorder %s9, 4
    %s16 = sphi 0, %s28
    %s17 = sphi 0, %s24
    %s18 = sphi 0, %s16
    %s19 = sphi 0, %s17
    %s20 = sphi 0, %s18
    %s21 = sphi 0, %s19
    %s33 = sphi 0, %s35
    %s36 = sphi 0, %s33
    %s37 = sphi 0, %s36
    %s53 = sphi 0, %s37
    %s57 = sphi 0, %s57
    %s59 = sphi 0, %s57
    %s60 = sphi 0, %s59
    %s74 = sphi 0, %s60
    %s78 = sphi 0, %s78
    %s80 = sphi 0, %s78
    %s81 = sphi 0, %s80
    %s95 = sphi 0, %s81
    %s103 = sphi 0, %s105
    %s106 = sphi 0, %s103
    %s107 = sphi 0, %s106
    %s123 = sphi 0, %s107
  $region4: #{tail2d_forward.1} parent=0 // loop_header_branch
    %12 = sbr.rel (%p10) target = $region8
  $region5: #{tail2d_forward.1} parent=0 // loop_body
    %s14 = ssub.s32 %s9, 1
    %s15 = ssub.s32 %s9, 2
    %s22 = sadd.s32 1, %s17
    %p23 = scmp.ge.s32.totalorder %s22, 1
    %s24 = scalar_select %p23, 0, %s22
    %s25 = sadd.s32 1, %s16
    %s26 = scalar_select %p23, %s25, %s16
    %p27 = scmp.ge.s32.totalorder %s26, 2
    %s28 = scalar_select %p27, 0, %s26
    %s29 = ssub.s32 %s16, %s28
    %s30 = ssub.s32 %s17, %s24
    %s31 = sor.u32 %s29, %s30
    %p32 = scmp.eq.s32.totalorder %s31, 0
    %s34 = sadd.s32 %s33, 1
    %s35 = scalar_select %p32, %s33, %s34
    %p38 = pneg %p32
    %p39 = scmp.eq.s32.totalorder %s9, 1
    %p40 = por %p38, %p39
    %p41 = scmp.ne.s32.totalorder %s33, %s36
    %p42 = scmp.eq.s32.totalorder %s9, 0
    %p43 = por %p41, %p42
    %p44 = scmp.ne.s32.totalorder %s33, %s36
    %p45 = scmp.eq.s32.totalorder %s14, 1
    %p46 = por %p44, %p45
    %p47 = scmp.ne.s32.totalorder %s36, %s37
    %p48 = scmp.eq.s32.totalorder %s14, 0
    %p49 = por %p47, %p48
    %p50 = scmp.ne.s32.totalorder %s36, %s37
    %p51 = scmp.eq.s32.totalorder %s15, 1
    %p52 = por %p50, %p51
    %p54 = scmp.ne.s32.totalorder %s37, %s53
    %p55 = scmp.eq.s32.totalorder %s15, 0
    %p56 = por %p54, %p55
    %s58 = sadd.s32 %s57, 1
    %p61 = scmp.eq.s32.totalorder %s9, 1
    %p62 = scmp.ne.s32.totalorder %s57, %s59
    %p63 = scmp.eq.s32.totalorder %s9, 0
    %p64 = por %p62, %p63
    %p65 = scmp.ne.s32.totalorder %s57, %s59
    %p66 = scmp.eq.s32.totalorder %s14, 1
    %p67 = por %p65, %p66
    %p68 = scmp.ne.s32.totalorder %s59, %s60
    %p69 = scmp.eq.s32.totalorder %s14, 0
    %p70 = por %p68, %p69
    %p71 = scmp.ne.s32.totalorder %s59, %s60
    %p72 = scmp.eq.s32.totalorder %s15, 1
    %p73 = por %p71, %p72
    %p75 = scmp.ne.s32.totalorder %s60, %s74
    %p76 = scmp.eq.s32.totalorder %s15, 0
    %p77 = por %p75, %p76
    %s79 = sadd.s32 %s78, 1
    %p82 = scmp.eq.s32.totalorder %s9, 1
    %p83 = scmp.ne.s32.totalorder %s78, %s80
    %p84 = scmp.eq.s32.totalorder %s9, 0
    %p85 = por %p83, %p84
    %p86 = scmp.ne.s32.totalorder %s78, %s80
    %p87 = scmp.eq.s32.totalorder %s14, 1
    %p88 = por %p86, %p87
    %p89 = scmp.ne.s32.totalorder %s80, %s81
    %p90 = scmp.eq.s32.totalorder %s14, 0
    %p91 = por %p89, %p90
    %p92 = scmp.ne.s32.totalorder %s80, %s81
    %p93 = scmp.eq.s32.totalorder %s15, 1
    %p94 = por %p92, %p93
    %p96 = scmp.ne.s32.totalorder %s81, %s95
    %p97 = scmp.eq.s32.totalorder %s15, 0
    %p98 = por %p96, %p97
    %s99 = ssub.s32 %s16, %s28
    %s100 = ssub.s32 %s17, %s24
    %s101 = sor.u32 %s99, %s100
    %p102 = scmp.eq.s32.totalorder %s101, 0
    %s104 = sadd.s32 %s103, 1
    %s105 = scalar_select %p102, %s103, %s104
    %p108 = pneg %p102
    %p109 = scmp.eq.s32.totalorder %s9, 1
    %p110 = por %p108, %p109
    %p111 = scmp.ne.s32.totalorder %s103, %s106
    %p112 = scmp.eq.s32.totalorder %s9, 0
    %p113 = por %p111, %p112
    %p114 = scmp.ne.s32.totalorder %s103, %s106
    %p115 = scmp.eq.s32.totalorder %s14, 1
    %p116 = por %p114, %p115
    %p117 = scmp.ne.s32.totalorder %s106, %s107
    %p118 = scmp.eq.s32.totalorder %s14, 0
    %p119 = por %p117, %p118
    %p120 = scmp.ne.s32.totalorder %s106, %s107
    %p121 = scmp.eq.s32.totalorder %s15, 1
    %p122 = por %p120, %p121
    %p124 = scmp.ne.s32.totalorder %s107, %s123
    %p125 = scmp.eq.s32.totalorder %s15, 0
    %p126 = por %p124, %p125
    %p127 = scmp.le.s32.totalorder 1, %s9
    %p128 = scmp.lt.s32.totalorder %s9, 3
    %p129 = pnand %p127, %p128
    %p130 = pneg %p129
    // Predicated region
    $region9: #{tail2d_forward.1} parent=5 // pred_check
      _
    $region10: #{tail2d_forward.1} parent=5 // pred_check_branch
      %132 = sbr.rel (%p129) target = $region12
    $region11: #{tail2d_forward.1} parent=5 // pred_region
      %s133 = ssub.s32 %s9, 1
      // Predicated region
      $region13: #{tail2d_forward.1} parent=11 // pred_check
        %p134 = pneg %p70
      $region14: #{tail2d_forward.1} parent=11 // pred_check_branch
        %136 = sbr.rel (%p134) target = $region16
      $region15: #{tail2d_forward.1} parent=11 // pred_region
        _
      $region16: #{tail2d_forward.1} parent=11 // pred_fallthru
        _
      // Predicated region
      $region17: #{tail2d_forward.1} parent=11 // pred_check
        %p137 = pneg %p91
      $region18: #{tail2d_forward.1} parent=11 // pred_check_branch
        %139 = sbr.rel (%p137) target = $region20
      $region19: #{tail2d_forward.1} parent=11 // pred_region
        _
      $region20: #{tail2d_forward.1} parent=11 // pred_fallthru
        _
    $region12: #{tail2d_forward.1} parent=5 // pred_fallthru
      _
    %p140 = scmp.lt.s32.totalorder %s9, 2
    // Predicated region
    $region21: #{tail2d_forward.1} parent=5 // pred_check
      %p141 = pneg %p140
    $region22: #{tail2d_forward.1} parent=5 // pred_check_branch
      %143 = sbr.rel (%p141) target = $region24
    $region23: #{tail2d_forward.1} parent=5 // pred_region
      // Predicated region
      $region25: #{tail2d_forward.1} parent=23 // pred_check
        %p144 = pneg %p43
      $region26: #{tail2d_forward.1} parent=23 // pred_check_branch
        %146 = sbr.rel (%p144) target = $region28
      $region27: #{tail2d_forward.1} parent=23 // pred_region
        %s147 = smul.u32 2, %s17
        %p148 = scmp.lt.s32.totalorder %s16, 1
        %s149 = scalar_select %p148, %s16, 1
        %p150 = scmp.lt.s32.totalorder %s147, 1
        %s151 = scalar_select %p150, %s147, 1
        %s152 = smul.addr %s149, 8
        %s153 = sadd.s32 %s151, %s152
        %s154 = smul.addr %s153, 8
        %s155 = scalar_lea.vmem %s0, %s154
        %s156 = smul.u32 2, %s17
      $region28: #{tail2d_forward.1} parent=23 // pred_fallthru
        _
    $region24: #{tail2d_forward.1} parent=5 // pred_fallthru
      _
    %p157 = scmp.le.s32.totalorder 1, %s9
    %p158 = scmp.lt.s32.totalorder %s9, 3
    %p159 = pnand %p157, %p158
    %p160 = pneg %p159
    // Predicated region
    $region29: #{tail2d_forward.1} parent=5 // pred_check
      _
    $region30: #{tail2d_forward.1} parent=5 // pred_check_branch
      %162 = sbr.rel (%p159) target = $region32
    $region31: #{tail2d_forward.1} parent=5 // pred_region
      %s163 = ssub.s32 %s9, 1
      %s164 = smul.u32 2, %s19
      %p165 = scmp.lt.s32.totalorder %s18, 1
      %s166 = scalar_select %p165, %s18, 1
      %p167 = scmp.lt.s32.totalorder %s164, 1
      %s168 = scalar_select %p167, %s164, 1
      %s169 = smul.addr %s166, 8
      %s170 = sadd.s32 %s168, %s169
      %s171 = smul.addr %s170, 8
      %s172 = scalar_lea.vmem %s0, %s171
      %p173 = pneg %p49
      %p174 = pneg %p46
      %p175 = pneg %p70
      %p176 = pneg %p67
      %p177 = pneg %p91
      %p178 = pneg %p88
      %p179 = pneg %p119
      %p180 = pneg %p116
      %s181 = smul.u32 2, %s19
      %p182 = scmp.lt.s32.totalorder %s18, 1
      %s183 = scalar_select %p182, %s18, 1
      %p184 = scmp.lt.s32.totalorder %s181, 1
      %s185 = scalar_select %p184, %s181, 1
      %s186 = smul.addr %s183, 2
      %s187 = sadd.s32 %s185, %s186
      %s188 = smul.addr %s187, 4
      %s189 = scalar_lea.vmem %s3, %s188
      %s190 = smul.u32 2, %s19
      %p191 = scmp.lt.s32.totalorder %s18, 1
      %s192 = scalar_select %p191, %s18, 1
      %p193 = scmp.lt.s32.totalorder %s190, 1
      %s194 = scalar_select %p193, %s190, 1
      %s195 = smul.addr %s192, 8
      %s196 = sadd.s32 %s194, %s195
      %s197 = smul.addr %s196, 8
      %s198 = scalar_lea.vmem %s0, %s197
      %s199 = smul.u32 2, %s19
      %s200 = smul.u32 2, %s19
      %p201 = scmp.lt.s32.totalorder %s18, 1
      %s202 = scalar_select %p201, %s18, 1
      %p203 = scmp.lt.s32.totalorder %s200, 1
      %s204 = scalar_select %p203, %s200, 1
      %s205 = smul.addr %s202, 2
      %s206 = sadd.s32 %s204, %s205
      %s207 = smul.addr %s206, 4
      %s208 = scalar_lea.vmem %s3, %s207
      %s209 = smul.u32 2, %s19
      %v211 = vld [vmem:[%s198] sm:$0xff]
      %v212 = vld [vmem:[%s198 + $0x8] sm:$0xff]
      %v213 = vld [vmem:[%s198 + $0x10] sm:$0xff]
      %v214 = vld [vmem:[%s198 + $0x18] sm:$0xff]
      %v215 = vld [vmem:[%s198 + $0x20] sm:$0xff]
      %v216 = vld [vmem:[%s198 + $0x28] sm:$0xff]
      %v217 = vld [vmem:[%s198 + $0x30] sm:$0xff]
      %v218 = vld [vmem:[%s198 + $0x38] sm:$0xff]
      %v219 = vpack.c.bf16 %v213, %v211
      %v220 = vpack.c.bf16 %v214, %v212
      %v221 = vpack.c.bf16 %v217, %v215
      %v222 = vpack.c.bf16 %v218, %v216
      %v223 = vld [vmem:[%s1] sm:$0x3]
      %v224 = vld [vmem:[%s2] sm:$0xf]
      %226 = vset.pattern.permute.xlu0 0
      %227 = vperm.xlu0 %226, %v224
      %v228 = vpop.permute.xlu0 %227
      %vm230 = vcmask 261120
      %v232 = vsel %vm230, %v223, 0
      %234 = vmatprep.subr.bf16.mxu0 %v220
      %235 = vmatpush1.bf16.msra.mxu0 %v219
      %236 = vmatprep.subr.bf16.mxu0 %v222
      %237 = vmatpush1.bf16.msra.mxu0 %v221
      %238 = vmatprep.subr.bf16.mxu0 0
      %239 = vmatpush1.bf16.msra.mxu0 0
      %240 = vmatprep.subr.bf16.mxu0 0
      %241 = vmatpush1.bf16.msra.mxu0 0
      %242 = vmatprep.subr.bf16.mxu0 0
      %243 = vmatpush1.bf16.msra.mxu0 0
      %244 = vmatprep.subr.bf16.mxu0 0
      %245 = vmatpush1.bf16.msra.mxu0 0
      %246 = vmatprep.subr.bf16.mxu0 0
      %247 = vmatpush1.bf16.msra.mxu0 0
      %248 = vmatprep.subr.bf16.mxu0 0
      %249 = vmatpush1.bf16.msra.mxu0 0
      %250 = vmatprep.subr.bf16.mxu0 0
      %251 = vmatpush1.bf16.msra.mxu0 0
      %252 = vmatprep.subr.bf16.mxu0 0
      %253 = vmatpush1.bf16.msra.mxu0 0
      %254 = vmatprep.subr.bf16.mxu0 0
      %255 = vmatpush1.bf16.msra.mxu0 0
      %256 = vmatprep.subr.bf16.mxu0 0
      %257 = vmatpush1.bf16.msra.mxu0 0
      %258 = vmatprep.subr.bf16.mxu0 0
      %259 = vmatpush1.bf16.msra.mxu0 0
      %260 = vmatprep.subr.bf16.mxu0 0
      %261 = vmatpush1.bf16.msra.mxu0 0
      %262 = vmatprep.subr.bf16.mxu0 0
      %263 = vmatpush1.bf16.msra.mxu0 0
      %264 = vmatprep.subr.bf16.mxu0 0
      %265 = vmatpush1.bf16.msra.mxu0 0
      %266 = vmatprep.mubr.bf16.mxu0 0
      %267 = vmatmul.mubr.bf16.gmra.mrb[0].mxu0 %v232
      %v268 = vpop.f32.mrb[0].mxu0
      %v269 = vadd.f32 %v228, %v268
      %v270 = vpop.f32.mrb[0].mxu0
      %v271 = vadd.f32 %v228, %v270
      %v272 = vpop.f32.mrb[0].mxu0
      %v273 = vpop.f32.mrb[0].mxu0
      %274 = vdwg.mxu0
      %v277 = vcombine.low %v269, %v271
      %279 = vst [vmem:[%s208] sm:$0xff] %v277
      %s280 = smul.u32 2, %s19
      %p281 = scmp.lt.s32.totalorder %s18, 1
      %s282 = scalar_select %p281, %s18, 1
      %p283 = scmp.lt.s32.totalorder %s280, 1
      %s284 = scalar_select %p283, %s280, 1
      %s285 = smul.addr %s282, 2
      %s286 = sadd.s32 %s284, %s285
      %s287 = smul.addr %s286, 4
      %s288 = scalar_lea.vmem %s3, %s287
      // Predicated region
      $region33: #{tail2d_forward.1} parent=31 // pred_check
        %p289 = pneg %p116
      $region34: #{tail2d_forward.1} parent=31 // pred_check_branch
        %291 = sbr.rel (%p289) target = $region36
      $region35: #{tail2d_forward.1} parent=31 // pred_region
        %s292 = smul.u32 2, %s19
      $region36: #{tail2d_forward.1} parent=31 // pred_fallthru
        _
    $region32: #{tail2d_forward.1} parent=5 // pred_fallthru
      _
    %p293 = scmp.le.s32.totalorder 2, %s9
    // Predicated region
    $region37: #{tail2d_forward.1} parent=5 // pred_check
      %p294 = pneg %p293
    $region38: #{tail2d_forward.1} parent=5 // pred_check_branch
      %296 = sbr.rel (%p294) target = $region40
    $region39: #{tail2d_forward.1} parent=5 // pred_region
      %s297 = ssub.s32 %s9, 2
      // Predicated region
      $region41: #{tail2d_forward.1} parent=39 // pred_check
        %p298 = pneg %p122
      $region42: #{tail2d_forward.1} parent=39 // pred_check_branch
        %300 = sbr.rel (%p298) target = $region44
      $region43: #{tail2d_forward.1} parent=39 // pred_region
        %s301 = smul.u32 2, %s21
        %p302 = scmp.lt.s32.totalorder %s20, 1
        %s303 = scalar_select %p302, %s20, 1
        %p304 = scmp.lt.s32.totalorder %s301, 1
        %s305 = scalar_select %p304, %s301, 1
        %s306 = smul.addr %s303, 2
        %s307 = sadd.s32 %s305, %s306
        %s308 = smul.addr %s307, 4
        %s309 = scalar_lea.vmem %s3, %s308
      $region44: #{tail2d_forward.1} parent=39 // pred_fallthru
        _
    $region40: #{tail2d_forward.1} parent=5 // pred_fallthru
      _
  $region6: #{tail2d_forward.1} parent=0 // loop_footer
    %s13 = sadd.s32 1, %s9
  $region7: #{tail2d_forward.1} parent=0 // loop_footer_branch
    %8 = sbr.rel target = $region3
  $region8: #{tail2d_forward.1} parent=0 // loop_exit
    _

</llo_original>
